<compile_context>
chip_gen: v5e
topology: v5e:2x2
jax: 0.10.0
libtpu: 0.0.40
codegen_flags: <defaults>
</compile_context>

<pallas_src>
import jax
import jax.numpy as jnp
from jax.experimental import pallas as pl
from jax.experimental.pallas import tpu as pltpu

P_DROP = 0.5
SCALE = 1.0 / (1.0 - P_DROP)                       # 2.0
KEEP_THRESHOLD = int((1.0 - P_DROP) * (2 ** 32))   # keep if hash < threshold

LANES = 128      # vreg lane width
SUBLANES = 8     # f32 sublane granularity
TILE_ROWS = 512  # 512 x 128 f32 = 256 KiB per buffer; fits every generation


def dropout_kernel(seed_ref, x_ref, o_ref):
    tm, lanes = x_ref.shape
    base = pl.program_id(0) * tm                   # global row offset of this tile

    # Global element index of every entry in the tile (grid-invariant).
    row = jax.lax.broadcasted_iota(jnp.int32, (tm, lanes), 0)
    col = jax.lax.broadcasted_iota(jnp.int32, (tm, lanes), 1)
    idx = ((base + row) * lanes + col).astype(jnp.uint32)

    # splitmix32-style hash of (index, seed) -> uniform uint32 per element.
    z = idx + seed_ref[0].astype(jnp.uint32)
    z = z ^ (z >> 16)
    z = z * jnp.uint32(0x7FEB352D)
    z = z ^ (z >> 15)
    z = z * jnp.uint32(0x846CA68B)
    z = z ^ (z >> 16)

    keep = z < jnp.uint32(KEEP_THRESHOLD)          # Bernoulli(1 - p) keep mask
    x = x_ref[...]
    o_ref[...] = jnp.where(keep, x * jnp.asarray(SCALE, x.dtype),
                           jnp.asarray(0.0, x.dtype))


def pallas_dropout(x, seed: int):
    """Dropout with p=0.5, training=True (inverted-dropout scaling)."""
    n = x.size

    # Lane-dense 2-D slab: (rows, 128), rows a multiple of the sublane count
    # and of the tile height so every block is full.
    rows = pl.cdiv(n, LANES)
    rows = ((rows + SUBLANES - 1) // SUBLANES) * SUBLANES
    tm = min(TILE_ROWS, rows)
    rows = ((rows + tm - 1) // tm) * tm
    padded = rows * LANES

    xf = jnp.pad(jnp.ravel(x), (0, padded - n))
    x2d = xf.reshape(rows, LANES)
    seed_arr = jnp.array([seed], dtype=jnp.int32)

    out2d = pl.pallas_call(
        dropout_kernel,
        out_shape=jax.ShapeDtypeStruct((rows, LANES), x.dtype),
        grid_spec=pltpu.PrefetchScalarGridSpec(
            num_scalar_prefetch=1,                 # seed lives in SMEM
            grid=(rows // tm,),
            in_specs=[pl.BlockSpec((tm, LANES), lambda i, seed: (i, 0))],
            out_specs=pl.BlockSpec((tm, LANES), lambda i, seed: (i, 0)),
        ),
        compiler_params=pltpu.CompilerParams(
            dimension_semantics=("parallel",),     # megacore split on v7x
            vmem_limit_bytes=64 * 1024 * 1024,
        ),
    )(seed_arr, x2d)

    return out2d.reshape(-1)[:n].reshape(x.shape)


if __name__ == "__main__":
    key = jax.random.PRNGKey(0)

    # Shape from the PyTorch spec: x1 = torch.randn(1, 2, 2)
    x1 = jax.random.normal(key, (1, 2, 2), dtype=jnp.float32)
    out = jax.block_until_ready(pallas_dropout(x1, seed=0))
    ok_small = bool(jnp.all((out == 0) | jnp.isclose(out, SCALE * x1)))
    assert ok_small, "dropout semantics violated (small input)"

    # Larger sanity check: every element is 0 or 2*x, keep-rate near 0.5.
    x_big = jax.random.normal(jax.random.PRNGKey(1), (2, 4, 16, 16),
                              dtype=jnp.float32)
    out_big = jax.block_until_ready(pallas_dropout(x_big, seed=123))
    ok_big = bool(jnp.all((out_big == 0) | jnp.isclose(out_big, SCALE * x_big)))
    assert ok_big, "dropout semantics violated (large input)"
    keep_frac = float(jnp.mean(out_big != 0))
    assert 0.35 < keep_frac < 0.65, f"keep fraction {keep_frac} far from 0.5"

    print("KERNEL_OK")
</pallas_src>

<mosaic_0001>
module attributes {stable_mosaic.version = 11 : i64} {
  func.func @dropout_kernel(%arg0: i32, %arg1: memref<1xi32, #tpu.memory_space<smem>>, %arg2: memref<8x128xf32, #tpu.memory_space<vmem>>, %arg3: memref<8x128xf32, #tpu.memory_space<vmem>>) attributes {dimension_semantics = [#tpu.dimension_semantics<parallel>], iteration_bounds = array<i64: 1>, scalar_prefetch = 1 : i64, scratch_operands = 0 : i64, tpu.core_type = #tpu.core_type<tc>, window_params = [{transform_indices = @transform_0, window_bounds = array<i64: 8, 128>}, {transform_indices = @transform_1, window_bounds = array<i64: 8, 128>}]} {
    %c8_i32 = arith.constant 8 : i32
    %0 = arith.muli %arg0, %c8_i32 : i32
    %1 = tpu.iota {dimensions = array<i32: 0>} : vector<8x128xi32>
    %2 = tpu.iota {dimensions = array<i32: 1>} : vector<8x128xi32>
    %3 = vector.broadcast %0 : i32 to vector<8x128xi32>
    %4 = arith.addi %3, %1 : vector<8x128xi32>
    %c128_i32 = arith.constant 128 : i32
    %5 = vector.broadcast %c128_i32 : i32 to vector<8x128xi32>
    %6 = arith.muli %4, %5 : vector<8x128xi32>
    %7 = arith.addi %6, %2 : vector<8x128xi32>
    %c0 = arith.constant 0 : index
    %8 = memref.load %arg1[%c0] : memref<1xi32, #tpu.memory_space<smem>>
    %9 = vector.broadcast %8 : i32 to vector<8x128xi32>
    %10 = arith.addi %7, %9 : vector<8x128xi32>
    %c16_i32 = arith.constant 16 : i32
    %11 = vector.broadcast %c16_i32 : i32 to vector<8x128xi32>
    %12 = arith.shrui %10, %11 : vector<8x128xi32>
    %13 = arith.xori %10, %12 : vector<8x128xi32>
    %c2146121005_i32 = arith.constant 2146121005 : i32
    %14 = vector.broadcast %c2146121005_i32 : i32 to vector<8x128xi32>
    %15 = arith.muli %13, %14 : vector<8x128xi32>
    %c15_i32 = arith.constant 15 : i32
    %16 = vector.broadcast %c15_i32 : i32 to vector<8x128xi32>
    %17 = arith.shrui %15, %16 : vector<8x128xi32>
    %18 = arith.xori %15, %17 : vector<8x128xi32>
    %c-2073254261_i32 = arith.constant -2073254261 : i32
    %19 = vector.broadcast %c-2073254261_i32 : i32 to vector<8x128xi32>
    %20 = arith.muli %18, %19 : vector<8x128xi32>
    %c16_i32_0 = arith.constant 16 : i32
    %21 = vector.broadcast %c16_i32_0 : i32 to vector<8x128xi32>
    %22 = arith.shrui %20, %21 : vector<8x128xi32>
    %23 = arith.xori %20, %22 : vector<8x128xi32>
    %c-2147483648_i32 = arith.constant -2147483648 : i32
    %24 = vector.broadcast %c-2147483648_i32 : i32 to vector<8x128xi32>
    %25 = arith.cmpi ult, %23, %24 : vector<8x128xi32>
    %c0_1 = arith.constant 0 : index
    %c0_2 = arith.constant 0 : index
    %26 = vector.load %arg2[%c0_1, %c0_2] : memref<8x128xf32, #tpu.memory_space<vmem>>, vector<8x128xf32>
    %cst = arith.constant 2.000000e+00 : f32
    %27 = vector.broadcast %cst : f32 to vector<8x128xf32>
    %28 = arith.mulf %26, %27 : vector<8x128xf32>
    %cst_3 = arith.constant 0.000000e+00 : f32
    %29 = vector.broadcast %cst_3 : f32 to vector<8x128xf32>
    %30 = arith.select %25, %28, %29 : vector<8x128xi1>, vector<8x128xf32>
    %c0_4 = arith.constant 0 : index
    %c0_5 = arith.constant 0 : index
    %31 = vector.load %arg3[%c0_4, %c0_5] : memref<8x128xf32, #tpu.memory_space<vmem>>, vector<8x128xf32>
    tpu.vector_store %arg3[%c0_4, %c0_5], %30 {strides = array<i32>} : memref<8x128xf32, #tpu.memory_space<vmem>>, vector<8x128xf32>,
    return
  }
  func.func @transform_0(%arg0: i32, %arg1: memref<1xi32, #tpu.memory_space<smem>>) -> (i32, i32) {
    %c0_i32 = arith.constant 0 : i32
    %c0_i32_0 = arith.constant 0 : i32
    return %arg0, %c0_i32 : i32, i32
  }
  func.func @transform_1(%arg0: i32, %arg1: memref<1xi32, #tpu.memory_space<smem>>) -> (i32, i32) {
    %c0_i32 = arith.constant 0 : i32
    %c0_i32_0 = arith.constant 0 : i32
    return %arg0, %c0_i32 : i32, i32
  }
}

</mosaic_0001>

<llo_original>
// kernel: tpu_custom_call.1
$region0: #{tpu_custom_call.1}
  #allocation0 [shape = 'u32[]', space=smem, size = 0x4, offset = 0x4, fixed_abs, tag = 'smem constant byte address 0x4 - core index']
  #allocation1 [shape = 'u32[72,128]{1,0:T(1,128)}', space=vmem, size = 0x9000, scoped, tag = 'internal scratch']
  #allocation2 [shape = 's32[1]{0}', space=sflag, size = 0x4, scoped, tag = 'scoped memory for tpu_custom_call.1']
  #allocation3 [shape = 's32[1]{0:T(128)S(6)}', space=smem, size = 0x200, scoped, tag = 'prefetched SMEM operand 0']
  %s0 = inlined_call_operand.<no memory space> [shape: s32[1], index: 0, kind: input, shape index: {}]
  %s1 = inlined_call_operand.hbm [shape: f32[8,128], index: 1, kind: input, shape index: {}]
  %s2 = inlined_call_operand.hbm [shape: f32[8,128], index: 2, kind: output, shape index: {}]
  %s3 = sld [smem:[#allocation0]]
  $region18: #{tpu_custom_call.1} parent=0
    _
  %s5 = ssub.s32 1, %s3
  %s6 = scalar_select 0, %s5, %s3
  %7 = sst [smem:[#allocation3]] %s0
  $region1: #{tpu_custom_call.1} parent=0
    #allocation4 [shape = 'u8[4096]{0}', space=vmem, size = 0x1000, scoped, tag = 'input window, operand 1, single buffered']
    #allocation5 [shape = 's32[1]{0}', space=sflag, size = 0x4, scoped, tag = 'scoped memory for tpu_custom_call.1']
    #allocation6 [shape = 's32[1]{0}', space=sflag, size = 0x4, scoped, tag = 'scoped memory for tpu_custom_call.1']
    #allocation7 [shape = 'u8[4096]{0}', space=vmem, size = 0x1000, scoped, tag = 'output window, operand 0, single buffered']
    %8 = vsyncpa [#allocation5], 0
    %9 = vsyncpa [#allocation6], 0
    // Predicated region
    $region2: #{tpu_custom_call.1} parent=1 // pred_check
      _
    $region3: #{tpu_custom_call.1} parent=1 // pred_check_branch
      %11 = sbr.rel (0) target = $region5
    $region4: #{tpu_custom_call.1} parent=1 // pred_region
      %13 = vsyncadd [#allocation5], 0
      %s15 = sshll.u32 %s1, 4
      %s16 = int_to_ptr.hbm [resolvable:$true] %s15
      %s17 = sshll.u32 [#allocation4], 4
      %s18 = int_to_ptr.vmem [resolvable:$true] %s17
      %20 = dma.hbm_to_vmem [thread:$0]  %s16, 128, %s18, [#allocation5]
    $region5: #{tpu_custom_call.1} parent=1 // pred_fallthru
      _
    // Predicated region
    $region6: #{tpu_custom_call.1} parent=1 // pred_check
      _
    $region7: #{tpu_custom_call.1} parent=1 // pred_check_branch
      %22 = sbr.rel (0) target = $region9
    $region8: #{tpu_custom_call.1} parent=1 // pred_region
      %24 = dma.done [#allocation5], 128
    $region9: #{tpu_custom_call.1} parent=1 // pred_fallthru
      _
    %s25 = smul.u32 0, 8
    %v26 = vlaneseq
    %v27 = vshrl.u32 %v26, 7
    %v28 = vlaneseq
    %v29 = vand.u32 %v28, 127
    %v30 = vstv %s25
    %v31 = vadd.s32 %v30, %v27
    %v32 = vmul.u32 %v31, 128
    %v33 = vadd.s32 %v32, %v29
    %s34 = sld [smem:[#allocation3]]
    %v35 = vstv %s34
    %v36 = vadd.s32 %v33, %v35
    %v37 = vshrl.u32 %v36, 16
    %v38 = vxor.u32 %v36, %v37
    %v39 = vmul.u32 %v38, 2146121005
    %v40 = vshrl.u32 %v39, 15
    %v41 = vxor.u32 %v39, %v40
    %v42 = vmul.u32 %v41, 2221713035
    %v43 = vshrl.u32 %v42, 16
    %v44 = vxor.u32 %v42, %v43
    %v45 = vadd.s32 %v44, 2147483648
    %vm47 = vcmp.lt.s32.totalorder %v45, 0
    %v48 = vld [vmem:[#allocation4] sm:$0xff]
    %v49 = vmul.f32 %v48, 2.0
    %v50 = vsel %vm47, %v49, 0.0
    %51 = vst [vmem:[#allocation7] sm:$0xff] %v50
    // Predicated region
    $region10: #{tpu_custom_call.1} parent=1 // pred_check
      _
    $region11: #{tpu_custom_call.1} parent=1 // pred_check_branch
      %53 = sbr.rel (0) target = $region13
    $region12: #{tpu_custom_call.1} parent=1 // pred_region
      %55 = vsyncadd [#allocation6], 0
      %s57 = sshll.u32 [#allocation7], 4
      %s58 = int_to_ptr.vmem [resolvable:$true] %s57
      %s59 = sshll.u32 %s2, 4
      %s60 = int_to_ptr.hbm [resolvable:$true] %s59
      %62 = dma.vmem_to_hbm [thread:$0]  %s58, 128, %s60, [#allocation6]
    $region13: #{tpu_custom_call.1} parent=1 // pred_fallthru
      _
    // Predicated region
    $region14: #{tpu_custom_call.1} parent=1 // pred_check
      _
    $region15: #{tpu_custom_call.1} parent=1 // pred_check_branch
      %64 = sbr.rel (0) target = $region17
    $region16: #{tpu_custom_call.1} parent=1 // pred_region
      %66 = dma.done [#allocation6], 128
    $region17: #{tpu_custom_call.1} parent=1 // pred_fallthru
      _
    %67 = vsyncpa [#allocation5], 1
    %68 = vsyncpa [#allocation6], 1

</llo_original>
